<compile_context>
chip_gen: v5e
topology: v5e:2x2
jax: 0.10.0
libtpu: 0.0.40
codegen_flags: <defaults>
</compile_context>

<pallas_src>
import functools

import jax
import jax.numpy as jnp
from jax.experimental import pallas as pl
from jax.experimental.pallas import tpu as pltpu

_LANE = 128
_SUBLANE = 8


def _softplus_like_torch(v):
    # PyTorch F.softplus (beta=1, threshold=20): x if x > 20 else log(1 + exp(x))
    return jnp.where(v > 20.0, v, jnp.log1p(jnp.exp(jnp.minimum(v, 20.0))))


def gaussian_mlp_kernel(x_ref, w1_ref, b1_ref, w2_ref, b2_ref, y_ref, *, half):
    # fc1: bf16 MXU operands, f32 accumulate; bias + relu in f32 on the VPU.
    h = jnp.dot(x_ref[...], w1_ref[...], preferred_element_type=jnp.float32)
    h = jnp.maximum(h + b1_ref[...], 0.0)
    # fc2
    y = jnp.dot(h.astype(w2_ref.dtype), w2_ref[...],
                preferred_element_type=jnp.float32)
    y = y + b2_ref[...]
    # Column mask instead of a lane-offset-4 slice: variance columns
    # (col >= half) get softplus + 1e-6, mean columns pass through unchanged.
    col = jax.lax.broadcasted_iota(jnp.int32, y.shape, dimension=1)
    y_ref[...] = jnp.where(col >= half,
                           _softplus_like_torch(y) + 1e-6,
                           y).astype(y_ref.dtype)


def gaussian_mlp_forward(x, w1, b1, w2, b2):
    """x: [B, D]; w1: [D, H]; b1: [H]; w2: [H, V]; b2: [V] (V even).
    Returns (mean [B, V//2], variance [B, V//2]) in float32."""
    B, D = x.shape
    H = w1.shape[1]
    V = w2.shape[1]
    assert V % 2 == 0, "output_variance_dim must be even"
    half = V // 2

    # Pad the output feature dim up to a multiple of 128 so the kernel writes a
    # single lane-dense slab; split into mean/variance happens here, outside.
    V_pad = pl.cdiv(V, _LANE) * _LANE
    w2_p = jnp.pad(w2, ((0, 0), (0, V_pad - V)))
    b2_p = jnp.pad(b2, (0, V_pad - V)).reshape(1, V_pad)
    b1_2d = b1.reshape(1, H)

    # Batch tiling: single resident block at small B, 512-row tiles otherwise.
    if B <= 512:
        TB = pl.cdiv(B, _SUBLANE) * _SUBLANE
    else:
        TB = 512
    B_pad = pl.cdiv(B, TB) * TB
    if B_pad != B:
        x = jnp.pad(x, ((0, B_pad - B), (0, 0)))

    # bf16 operands for the MXU; biases/activations stay f32.
    x_bf = x.astype(jnp.bfloat16)
    w1_bf = w1.astype(jnp.bfloat16)
    w2_bf = w2_p.astype(jnp.bfloat16)

    kernel = functools.partial(gaussian_mlp_kernel, half=half)
    y = pl.pallas_call(
        kernel,
        out_shape=jax.ShapeDtypeStruct((B_pad, V_pad), jnp.float32),
        grid_spec=pltpu.PrefetchScalarGridSpec(
            num_scalar_prefetch=0,
            grid=(B_pad // TB,),
            in_specs=[
                pl.BlockSpec((TB, D), lambda i: (i, 0)),      # x tile (pipelined)
                pl.BlockSpec((D, H), lambda i: (0, 0)),       # w1 resident
                pl.BlockSpec((1, H), lambda i: (0, 0)),       # b1 resident
                pl.BlockSpec((H, V_pad), lambda i: (0, 0)),   # w2 resident
                pl.BlockSpec((1, V_pad), lambda i: (0, 0)),   # b2 resident
            ],
            out_specs=pl.BlockSpec((TB, V_pad), lambda i: (i, 0)),
        ),
        compiler_params=pltpu.CompilerParams(
            dimension_semantics=("parallel",)),  # shards batch across v7x TCs
    )(x_bf, w1_bf, b1_2d, w2_bf, b2_p)

    y = y[:B]
    mean = y[:, :half]
    variance = y[:, half:V]
    return mean, variance


def init_params(key, input_dim, hidden_dim, output_variance_dim):
    # Deterministic init mimicking torch.nn.Linear (uniform +- 1/sqrt(fan_in)).
    k1, k2, k3, k4 = jax.random.split(key, 4)
    bound1 = 1.0 / jnp.sqrt(input_dim)
    bound2 = 1.0 / jnp.sqrt(hidden_dim)
    w1 = jax.random.uniform(k1, (input_dim, hidden_dim), jnp.float32,
                            -bound1, bound1)
    b1 = jax.random.uniform(k2, (hidden_dim,), jnp.float32, -bound1, bound1)
    w2 = jax.random.uniform(k3, (hidden_dim, output_variance_dim), jnp.float32,
                            -bound2, bound2)
    b2 = jax.random.uniform(k4, (output_variance_dim,), jnp.float32,
                            -bound2, bound2)
    return w1, b1, w2, b2


if __name__ == "__main__":
    input_dim = 16
    hidden_dim = 32
    output_variance_dim = 8   # split into mean (4) and variance (4)
    batch = 8

    key = jax.random.PRNGKey(0)
    kx, kp = jax.random.split(key)
    x = jax.random.normal(kx, (batch, input_dim), jnp.float32)
    w1, b1, w2, b2 = init_params(kp, input_dim, hidden_dim, output_variance_dim)

    mean, variance = gaussian_mlp_forward(x, w1, b1, w2, b2)
    jax.block_until_ready((mean, variance))

    # Plain-JAX reference with the same bf16 matmul-operand rounding.
    xr = x.astype(jnp.bfloat16).astype(jnp.float32)
    w1r = w1.astype(jnp.bfloat16).astype(jnp.float32)
    w2r = w2.astype(jnp.bfloat16).astype(jnp.float32)
    h_ref = jnp.maximum(xr @ w1r + b1, 0.0)
    y_ref = h_ref.astype(jnp.bfloat16).astype(jnp.float32) @ w2r + b2
    half = output_variance_dim // 2
    mean_ref = y_ref[:, :half]
    v = y_ref[:, half:]
    var_ref = jnp.where(v > 20.0, v,
                        jnp.log1p(jnp.exp(jnp.minimum(v, 20.0)))) + 1e-6

    assert jnp.allclose(mean, mean_ref, atol=1e-4, rtol=1e-4), "mean mismatch"
    assert jnp.allclose(variance, var_ref, atol=1e-4, rtol=1e-4), "variance mismatch"
    print("KERNEL_OK")
</pallas_src>

<mosaic_0001>
module attributes {stable_mosaic.version = 11 : i64} {
  func.func @gaussian_mlp_kernel(%arg0: i32, %arg1: memref<8x16xbf16, #tpu.memory_space<vmem>>, %arg2: memref<16x32xbf16, #tpu.memory_space<vmem>>, %arg3: memref<1x32xf32, #tpu.memory_space<vmem>>, %arg4: memref<32x128xbf16, #tpu.memory_space<vmem>>, %arg5: memref<1x128xf32, #tpu.memory_space<vmem>>, %arg6: memref<8x128xf32, #tpu.memory_space<vmem>>) attributes {dimension_semantics = [#tpu.dimension_semantics<parallel>], iteration_bounds = array<i64: 1>, scalar_prefetch = 0 : i64, scratch_operands = 0 : i64, tpu.core_type = #tpu.core_type<tc>, window_params = [{transform_indices = @transform_0, window_bounds = array<i64: 8, 16>}, {pipeline_mode = #tpu.pipeline_mode<synchronous>, transform_indices = @transform_1, window_bounds = array<i64: 16, 32>}, {pipeline_mode = #tpu.pipeline_mode<synchronous>, transform_indices = @transform_2, window_bounds = array<i64: 1, 32>}, {pipeline_mode = #tpu.pipeline_mode<synchronous>, transform_indices = @transform_3, window_bounds = array<i64: 32, 128>}, {pipeline_mode = #tpu.pipeline_mode<synchronous>, transform_indices = @transform_4, window_bounds = array<i64: 1, 128>}, {transform_indices = @transform_5, window_bounds = array<i64: 8, 128>}]} {
    %c0 = arith.constant 0 : index
    %c0_0 = arith.constant 0 : index
    %0 = vector.load %arg1[%c0, %c0_0] : memref<8x16xbf16, #tpu.memory_space<vmem>>, vector<8x16xbf16>
    %c0_1 = arith.constant 0 : index
    %c0_2 = arith.constant 0 : index
    %1 = vector.load %arg2[%c0_1, %c0_2] : memref<16x32xbf16, #tpu.memory_space<vmem>>, vector<16x32xbf16>
    %cst = arith.constant dense<0.000000e+00> : vector<8x32xf32>
    %2 = tpu.matmul %0, %1, %cst {dimension_numbers = #tpu.dot_dimension_numbers<[1], [0], [0], [1], [0, 0, 1, 1], [], []>} : vector<8x16xbf16>, vector<16x32xbf16>, vector<8x32xf32> -> vector<8x32xf32>
    %c0_3 = arith.constant 0 : index
    %c0_4 = arith.constant 0 : index
    %3 = vector.load %arg3[%c0_3, %c0_4] : memref<1x32xf32, #tpu.memory_space<vmem>>, vector<1x32xf32>
    %4 = vector.broadcast %3 : vector<1x32xf32> to vector<8x32xf32>
    %5 = arith.addf %2, %4 : vector<8x32xf32>
    %cst_5 = arith.constant 0.000000e+00 : f32
    %6 = vector.broadcast %cst_5 : f32 to vector<8x32xf32>
    %7 = arith.maximumf %5, %6 : vector<8x32xf32>
    %8 = arith.truncf %7 : vector<8x32xf32> to vector<8x32xbf16>
    %c0_6 = arith.constant 0 : index
    %c0_7 = arith.constant 0 : index
    %9 = vector.load %arg4[%c0_6, %c0_7] : memref<32x128xbf16, #tpu.memory_space<vmem>>, vector<32x128xbf16>
    %cst_8 = arith.constant dense<0.000000e+00> : vector<8x128xf32>
    %10 = tpu.matmul %8, %9, %cst_8 {dimension_numbers = #tpu.dot_dimension_numbers<[1], [0], [0], [1], [0, 0, 1, 1], [], []>} : vector<8x32xbf16>, vector<32x128xbf16>, vector<8x128xf32> -> vector<8x128xf32>
    %c0_9 = arith.constant 0 : index
    %c0_10 = arith.constant 0 : index
    %11 = vector.load %arg5[%c0_9, %c0_10] : memref<1x128xf32, #tpu.memory_space<vmem>>, vector<1x128xf32>
    %12 = vector.broadcast %11 : vector<1x128xf32> to vector<8x128xf32>
    %13 = arith.addf %10, %12 : vector<8x128xf32>
    %14 = tpu.iota {dimensions = array<i32: 1>} : vector<8x128xi32>
    %c4_i32 = arith.constant 4 : i32
    %15 = vector.broadcast %c4_i32 : i32 to vector<8x128xi32>
    %16 = arith.cmpi sge, %14, %15 : vector<8x128xi32>
    %cst_11 = arith.constant 2.000000e+01 : f32
    %17 = vector.broadcast %cst_11 : f32 to vector<8x128xf32>
    %18 = arith.cmpf ogt, %13, %17 : vector<8x128xf32>
    %cst_12 = arith.constant 2.000000e+01 : f32
    %19 = vector.broadcast %cst_12 : f32 to vector<8x128xf32>
    %20 = arith.minimumf %13, %19 : vector<8x128xf32>
    %21 = math.exp %20 : vector<8x128xf32>
    %22 = math.log1p %21 : vector<8x128xf32>
    %23 = arith.select %18, %13, %22 : vector<8x128xi1>, vector<8x128xf32>
    %cst_13 = arith.constant 9.99999997E-7 : f32
    %24 = vector.broadcast %cst_13 : f32 to vector<8x128xf32>
    %25 = arith.addf %23, %24 : vector<8x128xf32>
    %26 = arith.select %16, %25, %13 : vector<8x128xi1>, vector<8x128xf32>
    %c0_14 = arith.constant 0 : index
    %c0_15 = arith.constant 0 : index
    %27 = vector.load %arg6[%c0_14, %c0_15] : memref<8x128xf32, #tpu.memory_space<vmem>>, vector<8x128xf32>
    tpu.vector_store %arg6[%c0_14, %c0_15], %26 {strides = array<i32>} : memref<8x128xf32, #tpu.memory_space<vmem>>, vector<8x128xf32>,
    return
  }
  func.func @transform_0(%arg0: i32) -> (i32, i32) {
    %c0_i32 = arith.constant 0 : i32
    %c0_i32_0 = arith.constant 0 : i32
    return %arg0, %c0_i32 : i32, i32
  }
  func.func @transform_1(%arg0: i32) -> (i32, i32) {
    %c0_i32 = arith.constant 0 : i32
    %c0_i32_0 = arith.constant 0 : i32
    %c0_i32_1 = arith.constant 0 : i32
    return %c0_i32, %c0_i32_0 : i32, i32
  }
  func.func @transform_2(%arg0: i32) -> (i32, i32) {
    %c0_i32 = arith.constant 0 : i32
    %c0_i32_0 = arith.constant 0 : i32
    %c0_i32_1 = arith.constant 0 : i32
    return %c0_i32, %c0_i32_0 : i32, i32
  }
  func.func @transform_3(%arg0: i32) -> (i32, i32) {
    %c0_i32 = arith.constant 0 : i32
    %c0_i32_0 = arith.constant 0 : i32
    %c0_i32_1 = arith.constant 0 : i32
    return %c0_i32, %c0_i32_0 : i32, i32
  }
  func.func @transform_4(%arg0: i32) -> (i32, i32) {
    %c0_i32 = arith.constant 0 : i32
    %c0_i32_0 = arith.constant 0 : i32
    %c0_i32_1 = arith.constant 0 : i32
    return %c0_i32, %c0_i32_0 : i32, i32
  }
  func.func @transform_5(%arg0: i32) -> (i32, i32) {
    %c0_i32 = arith.constant 0 : i32
    %c0_i32_0 = arith.constant 0 : i32
    return %arg0, %c0_i32 : i32, i32
  }
}

</mosaic_0001>

<llo_original>
// kernel: tpu_custom_call.1
$region0: #{tpu_custom_call.1}
  #allocation0 [shape = 'u32[]', space=smem, size = 0x4, offset = 0x4, fixed_abs, tag = 'smem constant byte address 0x4 - core index']
  #allocation1 [shape = 'u32[72,128]{1,0:T(1,128)}', space=vmem, size = 0x9000, scoped, tag = 'internal scratch']
  %s0 = inlined_call_operand.hbm [shape: bf16[8,16], index: 0, kind: input, shape index: {}]
  %s1 = inlined_call_operand.hbm [shape: bf16[16,32], index: 1, kind: input, shape index: {}]
  %s2 = inlined_call_operand.vmem [shape: f32[1,32], index: 2, kind: input, shape index: {}]
  %s3 = inlined_call_operand.hbm [shape: bf16[32,128], index: 3, kind: input, shape index: {}]
  %s4 = inlined_call_operand.vmem [shape: f32[1,128], index: 4, kind: input, shape index: {}]
  %s5 = inlined_call_operand.hbm [shape: f32[8,128], index: 5, kind: output, shape index: {}]
  %s6 = sld [smem:[#allocation0]]
  $region42: #{tpu_custom_call.1} parent=0
    _
  %s8 = ssub.s32 1, %s6
  %s9 = scalar_select 0, %s8, %s6
  $region1: #{tpu_custom_call.1} parent=0
    #allocation2 [shape = 'u8[2048]{0}', space=vmem, size = 0x800, scoped, tag = 'input window, operand 0, single buffered']
    #allocation3 [shape = 's32[1]{0}', space=sflag, size = 0x4, scoped, tag = 'scoped memory for tpu_custom_call.1']
    #allocation4 [shape = 's32[1]{0}', space=sflag, size = 0x4, scoped, tag = 'scoped memory for tpu_custom_call.1']
    #allocation5 [shape = 'u8[4096]{0}', space=vmem, size = 0x1000, scoped, tag = 'input window, operand 1, single buffered']
    #allocation6 [shape = 's32[1]{0}', space=sflag, size = 0x4, scoped, tag = 'scoped memory for tpu_custom_call.1']
    #allocation7 [shape = 'u8[8192]{0}', space=vmem, size = 0x2000, scoped, tag = 'input window, operand 3, single buffered']
    #allocation8 [shape = 'u8[4096]{0}', space=vmem, size = 0x1000, scoped, tag = 'output window, operand 0, single buffered']
    %10 = vsyncpa [#allocation3], 0
    %11 = vsyncpa [#allocation6], 0
    %12 = vsyncpa [#allocation4], 0
    // Predicated region
    $region2: #{tpu_custom_call.1} parent=1 // pred_check
      _
    $region3: #{tpu_custom_call.1} parent=1 // pred_check_branch
      %14 = sbr.rel (0) target = $region5
    $region4: #{tpu_custom_call.1} parent=1 // pred_region
      %16 = vsyncadd [#allocation3], 0
      %s18 = sshll.u32 %s0, 4
      %s19 = int_to_ptr.hbm [resolvable:$true] %s18
      %s20 = sshll.u32 [#allocation2], 4
      %s21 = int_to_ptr.vmem [resolvable:$true] %s20
      %23 = dma.hbm_to_vmem [thread:$0]  %s19, 64, %s21, [#allocation3]
    $region5: #{tpu_custom_call.1} parent=1 // pred_fallthru
      _
    // Predicated region
    $region6: #{tpu_custom_call.1} parent=1 // pred_check
      _
    $region7: #{tpu_custom_call.1} parent=1 // pred_check_branch
      %25 = sbr.rel (0) target = $region9
    $region8: #{tpu_custom_call.1} parent=1 // pred_region
      %27 = vsyncadd [#allocation6], 0
      %s28 = sshll.u32 %s1, 4
      %s29 = int_to_ptr.hbm [resolvable:$true] %s28
      %s30 = sshll.u32 [#allocation5], 4
      %s31 = int_to_ptr.vmem [resolvable:$true] %s30
      %36 = dma.hbm_to_vmem [thread:$0]  %s29, 128, %s31, [#allocation6], 64, 64, 4
    $region9: #{tpu_custom_call.1} parent=1 // pred_fallthru
      _
    // Predicated region
    $region10: #{tpu_custom_call.1} parent=1 // pred_check
      _
    $region11: #{tpu_custom_call.1} parent=1 // pred_check_branch
      %38 = sbr.rel (0) target = $region13
    $region12: #{tpu_custom_call.1} parent=1 // pred_region
      _
    $region13: #{tpu_custom_call.1} parent=1 // pred_fallthru
      _
    // Predicated region
    $region14: #{tpu_custom_call.1} parent=1 // pred_check
      _
    $region15: #{tpu_custom_call.1} parent=1 // pred_check_branch
      %40 = sbr.rel (0) target = $region17
    $region16: #{tpu_custom_call.1} parent=1 // pred_region
      %42 = vsyncadd [#allocation6], 0
      %s43 = sshll.u32 %s3, 4
      %s44 = int_to_ptr.hbm [resolvable:$true] %s43
      %s45 = sshll.u32 [#allocation7], 4
      %s46 = int_to_ptr.vmem [resolvable:$true] %s45
      %51 = dma.hbm_to_vmem [thread:$0]  %s44, 256, %s46, [#allocation6], 64, 64, 4
    $region17: #{tpu_custom_call.1} parent=1 // pred_fallthru
      _
    // Predicated region
    $region18: #{tpu_custom_call.1} parent=1 // pred_check
      _
    $region19: #{tpu_custom_call.1} parent=1 // pred_check_branch
      %53 = sbr.rel (0) target = $region21
    $region20: #{tpu_custom_call.1} parent=1 // pred_region
      _
    $region21: #{tpu_custom_call.1} parent=1 // pred_fallthru
      _
    // Predicated region
    $region22: #{tpu_custom_call.1} parent=1 // pred_check
      _
    $region23: #{tpu_custom_call.1} parent=1 // pred_check_branch
      %55 = sbr.rel (0) target = $region25
    $region24: #{tpu_custom_call.1} parent=1 // pred_region
      %57 = dma.done [#allocation3], 64
    $region25: #{tpu_custom_call.1} parent=1 // pred_fallthru
      _
    // Predicated region
    $region26: #{tpu_custom_call.1} parent=1 // pred_check
      _
    $region27: #{tpu_custom_call.1} parent=1 // pred_check_branch
      %59 = sbr.rel (0) target = $region29
    $region28: #{tpu_custom_call.1} parent=1 // pred_region
      %61 = dma.done [#allocation6], 128
    $region29: #{tpu_custom_call.1} parent=1 // pred_fallthru
      _
    // Predicated region
    $region30: #{tpu_custom_call.1} parent=1 // pred_check
      _
    $region31: #{tpu_custom_call.1} parent=1 // pred_check_branch
      %63 = sbr.rel (0) target = $region33
    $region32: #{tpu_custom_call.1} parent=1 // pred_region
      %65 = dma.done [#allocation6], 256
    $region33: #{tpu_custom_call.1} parent=1 // pred_fallthru
      _
    %v67 = vld [vmem:[#allocation2] sm:$0xf]
    %v68 = vld [vmem:[#allocation5] sm:$0xf]
    %v69 = vld [vmem:[#allocation5 + $0x4] sm:$0xf]
    %v70 = vld [vmem:[%s2] sm:$0x1]
    %v72 = vperm.slane %v70, 0
    %v76 = vunpack.c.l.b16 %v68
    %v77 = vunpack.c.l.b16 %v69
    %v78 = vpack.c.b16 %v77, %v76
    %vm80 = vcmask 130048
    %v82 = vsel %vm80, %v67, 0
    %84 = vmatpush.bf16.msra.mxu0 0
    %85 = vmatpush.bf16.msra.mxu0 0
    %86 = vmatpush.bf16.msra.mxu0 0
    %87 = vmatpush.bf16.msra.mxu0 0
    %88 = vmatpush.bf16.msra.mxu0 0
    %89 = vmatpush.bf16.msra.mxu0 0
    %90 = vmatpush.bf16.msra.mxu0 0
    %91 = vmatpush.bf16.msra.mxu0 %v78
    %92 = vmatmul.bf16.gmra.mxu0 %v82
    %v93 = vpop.f32.mrf.mxu0
    %v94 = vadd.f32 %v72, %v93
    %v95 = vpop.f32.mrf.mxu0
    %96 = vdwg.mxu0
    %v97 = vmax.f32 %v94, 0.0
    %v98 = vpack.c.bf16 %v97, %v97
    %v99 = vld [vmem:[#allocation7] sm:$0xf]
    %v100 = vld [vmem:[#allocation7 + $0x4] sm:$0xf]
    %v101 = vld [vmem:[#allocation7 + $0x8] sm:$0xf]
    %v102 = vld [vmem:[#allocation7 + $0xc] sm:$0xf]
    %v103 = vld [vmem:[%s4] sm:$0x1]
    %v105 = vperm.slane %v103, 0
    %v111 = vunpack.c.l.b16 %v99
    %v112 = vunpack.c.l.b16 %v100
    %v113 = vunpack.c.l.b16 %v101
    %v114 = vunpack.c.l.b16 %v102
    %v115 = vpack.c.b16 %v112, %v111
    %v116 = vpack.c.b16 %v114, %v113
    %vm119 = vcmask 261120
    %v121 = vsel %vm119, %v98, 0
    %123 = vmatpush.bf16.msra.mxu0 0
    %124 = vmatpush.bf16.msra.mxu0 0
    %125 = vmatpush.bf16.msra.mxu0 0
    %126 = vmatpush.bf16.msra.mxu0 0
    %127 = vmatpush.bf16.msra.mxu0 0
    %128 = vmatpush.bf16.msra.mxu0 0
    %129 = vmatpush.bf16.msra.mxu0 %v116
    %130 = vmatpush.bf16.msra.mxu0 %v115
    %131 = vmatmul.bf16.gmra.mxu0 %v121
    %v132 = vpop.f32.mrf.mxu0
    %v133 = vadd.f32 %v105, %v132
    %v134 = vpop.f32.mrf.mxu0
    %135 = vdwg.mxu0
    %v136 = vlaneseq
    %v137 = vand.u32 %v136, 127
    %vm138 = vcmp.ge.s32.totalorder %v137, 4
    %vm139 = vcmp.gt.f32.partialorder %v133, 20.0
    %v140 = vmin.f32 %v133, 20.0
    %v141 = vmul.f32 %v140, 1.442695
    %v142 = vpow.pop %v141
    %v143 = vadd.f32 %v142, 1.0
    %v144 = vlog2.pop %v143
    %v145 = vmul.f32 %v144, 0.6931472
    %v146 = vmul.f32 -0.5, %v142
    %v147 = vadd.f32 %v146, 1.0
    %v148 = vmul.f32 %v147, %v142
    %v149 = vand.u32 2147483647, %v142
    %vm150 = vcmp.lt.f32.partialorder %v149, 0.0004427343
    %v151 = vsel %vm150, %v148, %v145
    %v152 = vsel %vm139, %v133, %v151
    %v153 = vadd.f32 %v152, 1e-06
    %v154 = vsel %vm138, %v153, %v133
    %155 = vst [vmem:[#allocation8] sm:$0xff] %v154
    // Predicated region
    $region34: #{tpu_custom_call.1} parent=1 // pred_check
      _
    $region35: #{tpu_custom_call.1} parent=1 // pred_check_branch
      %157 = sbr.rel (0) target = $region37
    $region36: #{tpu_custom_call.1} parent=1 // pred_region
      %159 = vsyncadd [#allocation4], 0
      %s161 = sshll.u32 [#allocation8], 4
      %s162 = int_to_ptr.vmem [resolvable:$true] %s161
      %s163 = sshll.u32 %s5, 4
      %s164 = int_to_ptr.hbm [resolvable:$true] %s163
      %166 = dma.vmem_to_hbm [thread:$0]  %s162, 128, %s164, [#allocation4]
    $region37: #{tpu_custom_call.1} parent=1 // pred_fallthru
      _
    // Predicated region
    $region38: #{tpu_custom_call.1} parent=1 // pred_check
      _
    $region39: #{tpu_custom_call.1} parent=1 // pred_check_branch
      %168 = sbr.rel (0) target = $region41
    $region40: #{tpu_custom_call.1} parent=1 // pred_region
      %170 = dma.done [#allocation4], 128
    $region41: #{tpu_custom_call.1} parent=1 // pred_fallthru
      _
    %171 = vsyncpa [#allocation3], 1
    %172 = vsyncpa [#allocation6], 1
    %173 = vsyncpa [#allocation4], 1

</llo_original>
